<compile_context>
chip_gen: v6e
topology: v6e:2x2x1
jax: 0.10.0
libtpu: 0.0.40
codegen_flags: <defaults>
</compile_context>

<pallas_src>
import jax
import jax.numpy as jnp
from jax.experimental import pallas as pl
from jax.experimental.pallas import tpu as pltpu


def _round_up(a, b):
    return (a + b - 1) // b * b


def _vmem_capacity_bytes():
    """Per-core VMEM capacity; conservative 64 MiB fallback (v7x per-TC) if query fails."""
    try:
        info = pltpu.get_tpu_info()
        cap = int(getattr(info, "vmem_capacity_bytes", 0))
        if cap > 0:
            return cap
    except Exception:
        pass
    return 64 << 20


def _pick_tm(M, tm_max):
    """Token-tile size: one 8-aligned tile for small M, else a 128-multiple minimizing padding."""
    if M <= min(tm_max, 256):
        return _round_up(max(M, 8), 8)
    cands = [c for c in (512, 256, 128) if c <= tm_max] or [128]
    return min(cands, key=lambda c: (_round_up(M, c) - M, -c))


def _pick_hidden_chunk(hidden, requested):
    for hc in (requested, 512, 256, 128):
        if hc is None:
            continue
        if hc <= hidden and hidden % hc == 0 and hc % 128 == 0:
            return hc
    return hidden  # full dim is always a legal block


# --------------------------------------------------------------------------------------
# Kernels
# --------------------------------------------------------------------------------------

def _mlp_resident_kernel(x_ref, w_fc_ref, b_fc_ref, w_val_ref, b_val_ref,
                         w_gate_ref, b_gate_ref, w_out_ref, b_out_ref, o_ref):
    # c_fc: bf16 MXU inputs, f32 accumulation.
    h = jnp.dot(x_ref[...], w_fc_ref[...], preferred_element_type=jnp.float32)
    h_bf = (h + b_fc_ref[...]).astype(jnp.bfloat16)

    # SwiGLU: compute the gate half first so its f32 temporaries die before `val` is live.
    gate = jnp.dot(h_bf, w_gate_ref[...], preferred_element_type=jnp.float32) + b_gate_ref[...]
    act_gate = gate * jax.nn.sigmoid(gate)            # silu, f32 on VPU/EUP
    val = jnp.dot(h_bf, w_val_ref[...], preferred_element_type=jnp.float32) + b_val_ref[...]
    act = (val * act_gate).astype(jnp.bfloat16)

    # c_proj; dropout(p=0) is identity.
    out = jnp.dot(act, w_out_ref[...], preferred_element_type=jnp.float32) + b_out_ref[...]
    o_ref[...] = out.astype(o_ref.dtype)


def _mlp_streamed_kernel(x_ref, w_fc_ref, b_fc_ref, w_val_ref, b_val_ref,
                         w_gate_ref, b_gate_ref, w_out_ref, b_out_ref, o_ref,
                         h_scratch, acc_scratch):
    j = pl.program_id(1)

    @pl.when(j == 0)
    def _():
        # c_fc once per M tile; keep h resident (bf16) across the hidden chunks.
        h = jnp.dot(x_ref[...], w_fc_ref[...], preferred_element_type=jnp.float32)
        h_scratch[...] = (h + b_fc_ref[...]).astype(jnp.bfloat16)
        acc_scratch[...] = jnp.zeros_like(acc_scratch)

    h_bf = h_scratch[...]
    gate = jnp.dot(h_bf, w_gate_ref[...], preferred_element_type=jnp.float32) + b_gate_ref[...]
    act_gate = gate * jax.nn.sigmoid(gate)
    val = jnp.dot(h_bf, w_val_ref[...], preferred_element_type=jnp.float32) + b_val_ref[...]
    act = (val * act_gate).astype(jnp.bfloat16)
    acc_scratch[...] += jnp.dot(act, w_out_ref[...], preferred_element_type=jnp.float32)

    @pl.when(j == pl.num_programs(1) - 1)
    def _():
        o_ref[...] = (acc_scratch[...] + b_out_ref[...]).astype(o_ref.dtype)


# --------------------------------------------------------------------------------------
# Wrapper
# --------------------------------------------------------------------------------------

def mlp_forward(x, params, *, tm=None, hidden_chunk=None, out_dtype=jnp.bfloat16,
                force_streamed=False):
    """x: (B, T, n_embd). Returns (B, T, n_embd) in `out_dtype` (default bf16)."""
    B, T, n_embd = x.shape
    M = B * T
    w_fc, b_fc, w_val, b_val, w_gate, b_gate, w_out, b_out = params
    hidden = w_fc.shape[1]

    vmem_cap = _vmem_capacity_bytes()
    vmem_cap_req = int(vmem_cap * 0.85)          # leave headroom for Mosaic internals

    # v7x (64 MiB/TC): tm=256 matches the 2x256 MXU; 128 MiB parts can afford tm=512.
    tm_max = tm if tm is not None else (256 if vmem_cap <= (64 << 20) else 512)
    tm = _pick_tm(M, tm_max)
    m_pad = _round_up(M, tm)
    grid_m = m_pad // tm

    # bf16 activation I/O; bf16 weights feed the MXU, biases stay f32.
    x2d = x.reshape(M, n_embd).astype(jnp.bfloat16)
    if m_pad != M:
        x2d = jnp.pad(x2d, ((0, m_pad - M), (0, 0)))
    w_fc_b = w_fc.astype(jnp.bfloat16)
    w_val_b = w_val.astype(jnp.bfloat16)
    w_gate_b = w_gate.astype(jnp.bfloat16)
    w_out_b = w_out.astype(jnp.bfloat16)
    b_fc2 = b_fc.reshape(1, -1).astype(jnp.float32)
    b_val2 = b_val.reshape(1, -1).astype(jnp.float32)
    b_gate2 = b_gate.reshape(1, -1).astype(jnp.float32)
    b_out2 = b_out.reshape(1, -1).astype(jnp.float32)

    # --- VMEM budgets (single-buffered weights count once; I/O tiles count twice) ---
    w_bytes = 2 * (w_fc.size + w_val.size + w_gate.size + w_out.size)        # bf16 weights
    b_bytes = 4 * (b_fc.size + b_val.size + b_gate.size + b_out.size)        # f32 biases
    io_bytes = 2 * 2 * tm * n_embd * 2                                       # x + out, 2 bufs, bf16
    interm_res = tm * hidden * (3 * 4 + 2)                                   # live f32 temps + h_bf
    need_resident = w_bytes + b_bytes + io_bytes + interm_res + (2 << 20)

    use_streamed = force_streamed or (need_resident > vmem_cap_req)
    flops = 2 * M * (n_embd * hidden + 2 * hidden * hidden + hidden * n_embd)
    args = (x2d, w_fc_b, b_fc2, w_val_b, b_val2, w_gate_b, b_gate2, w_out_b, b_out2)

    if not use_streamed:
        # ---------------- Resident-weight variant ----------------
        def run(single_buffer_weights):
            def const_spec(shape):
                if single_buffer_weights:
                    return pl.BlockSpec(shape, lambda i: (0, 0), pipeline_mode=pl.Buffered(1))
                return pl.BlockSpec(shape, lambda i: (0, 0))

            in_specs = [
                pl.BlockSpec((tm, n_embd), lambda i: (i, 0)),   # x tile (pipelined)
                const_spec((n_embd, hidden)),                   # w_fc
                const_spec((1, hidden)),                        # b_fc
                const_spec((hidden, hidden)),                   # w_val
                const_spec((1, hidden)),                        # b_val
                const_spec((hidden, hidden)),                   # w_gate
                const_spec((1, hidden)),                        # b_gate
                const_spec((hidden, n_embd)),                   # w_out
                const_spec((1, n_embd)),                        # b_out
            ]
            out_specs = pl.BlockSpec((tm, n_embd), lambda i: (i, 0))

            need = need_resident + (0 if single_buffer_weights else w_bytes + b_bytes)
            vmem_limit = int(min(max(int(need * 1.2), 32 << 20), vmem_cap_req))
            cost = pl.CostEstimate(
                flops=int(flops), transcendentals=int(M * hidden),
                bytes_accessed=int(2 * M * n_embd * 2 + w_bytes + b_bytes))

            return pl.pallas_call(
                _mlp_resident_kernel,
                out_shape=jax.ShapeDtypeStruct((m_pad, n_embd), out_dtype),
                grid=(grid_m,),
                in_specs=in_specs,
                out_specs=out_specs,
                compiler_params=pltpu.CompilerParams(
                    dimension_semantics=("parallel",),
                    vmem_limit_bytes=vmem_limit),
                cost_estimate=cost,
            )(*args)

        try:
            out2d = run(True)
        except Exception:
            # Fallback if this Pallas build rejects Buffered(1) on constant-index inputs.
            out2d = run(False)
    else:
        # ---------------- Hidden-streamed variant (v7x / large n_embd) ----------------
        hc = _pick_hidden_chunk(hidden, hidden_chunk)
        grid_h = hidden // hc

        def run(single_buffer_const):
            def const_spec(shape):
                if single_buffer_const:
                    return pl.BlockSpec(shape, lambda i, j: (0, 0), pipeline_mode=pl.Buffered(1))
                return pl.BlockSpec(shape, lambda i, j: (0, 0))

            in_specs = [
                pl.BlockSpec((tm, n_embd), lambda i, j: (i, 0)),   # x tile (reused across j)
                const_spec((n_embd, hidden)),                      # w_fc (resident)
                const_spec((1, hidden)),                           # b_fc
                pl.BlockSpec((hidden, hc), lambda i, j: (0, j)),   # w_val chunk (streamed)
                pl.BlockSpec((1, hc), lambda i, j: (0, j)),        # b_val chunk
                pl.BlockSpec((hidden, hc), lambda i, j: (0, j)),   # w_gate chunk
                pl.BlockSpec((1, hc), lambda i, j: (0, j)),        # b_gate chunk
                pl.BlockSpec((hc, n_embd), lambda i, j: (j, 0)),   # w_out chunk
                const_spec((1, n_embd)),                           # b_out
            ]
            out_specs = pl.BlockSpec((tm, n_embd), lambda i, j: (i, 0))
            scratch_shapes = [pltpu.VMEM((tm, hidden), jnp.bfloat16),   # h (per M tile)
                              pltpu.VMEM((tm, n_embd), jnp.float32)]   # c_proj accumulator

            stream_w_bytes = 2 * (w_val.size + w_gate.size + w_out.size)
            stream_step = (2 if True else 1) * 2 * (2 * hidden * hc + hc * n_embd)  # dbl-buffered chunks
            resident_bytes = (2 * w_fc.size + b_bytes) * (1 if single_buffer_const else 2)
            scratch_bytes = tm * hidden * 2 + tm * n_embd * 4
            interm = tm * hc * 3 * 4
            need = resident_bytes + stream_step + io_bytes + scratch_bytes + interm + (2 << 20)
            vmem_limit = int(min(max(int(need * 1.2), 32 << 20), vmem_cap_req))
            cost = pl.CostEstimate(
                flops=int(flops), transcendentals=int(M * hidden),
                bytes_accessed=int(2 * M * n_embd * 2 + grid_m * stream_w_bytes
                                   + 2 * w_fc.size + b_bytes))

            return pl.pallas_call(
                _mlp_streamed_kernel,
                out_shape=jax.ShapeDtypeStruct((m_pad, n_embd), out_dtype),
                grid=(grid_m, grid_h),
                in_specs=in_specs,
                out_specs=out_specs,
                scratch_shapes=scratch_shapes,
                compiler_params=pltpu.CompilerParams(
                    dimension_semantics=("parallel", "arbitrary"),
                    vmem_limit_bytes=vmem_limit),
                cost_estimate=cost,
            )(*args)

        try:
            out2d = run(True)
        except Exception:
            out2d = run(False)

    return out2d[:M].reshape(B, T, n_embd)


# --------------------------------------------------------------------------------------
# Params / reference
# --------------------------------------------------------------------------------------

def init_params(key, n_embd, weight_dtype=jnp.bfloat16):
    """Weights stored transposed (in, out) in bf16; biases f32."""
    hidden = 4 * n_embd
    k = jax.random.split(key, 8)
    w_fc = (jax.random.normal(k[0], (n_embd, hidden), jnp.float32) * 0.02).astype(weight_dtype)
    b_fc = jax.random.normal(k[1], (hidden,), jnp.float32) * 0.02
    w_val = (jax.random.normal(k[2], (hidden, hidden), jnp.float32) * 0.02).astype(weight_dtype)
    b_val = jax.random.normal(k[3], (hidden,), jnp.float32) * 0.02
    w_gate = (jax.random.normal(k[4], (hidden, hidden), jnp.float32) * 0.02).astype(weight_dtype)
    b_gate = jax.random.normal(k[5], (hidden,), jnp.float32) * 0.02
    w_out = (jax.random.normal(k[6], (hidden, n_embd), jnp.float32) * 0.02).astype(weight_dtype)
    b_out = jax.random.normal(k[7], (n_embd,), jnp.float32) * 0.02
    return (w_fc, b_fc, w_val, b_val, w_gate, b_gate, w_out, b_out)


def mlp_reference(x, params):
    """Plain-JAX f32 reference (weights upcast to f32)."""
    w_fc, b_fc, w_val, b_val, w_gate, b_gate, w_out, b_out = params
    f32 = jnp.float32
    h = x.astype(f32) @ w_fc.astype(f32) + b_fc
    val = h @ w_val.astype(f32) + b_val
    gate = h @ w_gate.astype(f32) + b_gate
    act = val * (gate * jax.nn.sigmoid(gate))
    return act @ w_out.astype(f32) + b_out


if __name__ == "__main__":
    # Primary small config: n_embd=32 -> hidden=128 (exercises the resident-weight path).
    n_embd, B, T = 32, 2, 8
    kx, kp = jax.random.split(jax.random.PRNGKey(0))
    x = jax.random.normal(kx, (B, T, n_embd), jnp.float32)
    params = init_params(kp, n_embd)

    out = jax.block_until_ready(mlp_forward(x, params))
    ref = mlp_reference(x, params)
    assert out.shape == (B, T, n_embd)
    assert jnp.allclose(out.astype(jnp.float32), ref, atol=2e-3, rtol=2e-2), (
        float(jnp.max(jnp.abs(out.astype(jnp.float32) - ref))))

    # Also exercise the hidden-streamed (v7x / large-model) variant on the same inputs.
    out_s = jax.block_until_ready(
        mlp_forward(x, params, force_streamed=True, hidden_chunk=128))
    assert jnp.allclose(out_s.astype(jnp.float32), ref, atol=2e-3, rtol=2e-2), (
        float(jnp.max(jnp.abs(out_s.astype(jnp.float32) - ref))))

    # Multi-chunk streamed accumulation: n_embd=128 -> hidden=512, 4 chunks of 128.
    n_embd2 = 128
    kx2, kp2 = jax.random.split(jax.random.PRNGKey(1))
    x2 = jax.random.normal(kx2, (2, 8, n_embd2), jnp.float32)
    params2 = init_params(kp2, n_embd2)
    out2 = jax.block_until_ready(
        mlp_forward(x2, params2, force_streamed=True, hidden_chunk=128))
    ref2 = mlp_reference(x2, params2)
    assert jnp.allclose(out2.astype(jnp.float32), ref2, atol=3e-3, rtol=3e-2), (
        float(jnp.max(jnp.abs(out2.astype(jnp.float32) - ref2))))

    print("KERNEL_OK")
</pallas_src>

<mosaic_0001>
module attributes {stable_mosaic.version = 11 : i64} {
  func.func @_mlp_resident_kernel(%arg0: i32, %arg1: memref<16x32xbf16, #tpu.memory_space<vmem>>, %arg2: memref<32x128xbf16, #tpu.memory_space<vmem>>, %arg3: memref<1x128xf32, #tpu.memory_space<vmem>>, %arg4: memref<128x128xbf16, #tpu.memory_space<vmem>>, %arg5: memref<1x128xf32, #tpu.memory_space<vmem>>, %arg6: memref<128x128xbf16, #tpu.memory_space<vmem>>, %arg7: memref<1x128xf32, #tpu.memory_space<vmem>>, %arg8: memref<128x32xbf16, #tpu.memory_space<vmem>>, %arg9: memref<1x32xf32, #tpu.memory_space<vmem>>, %arg10: memref<16x32xbf16, #tpu.memory_space<vmem>>) attributes {dimension_semantics = [#tpu.dimension_semantics<parallel>], iteration_bounds = array<i64: 1>, scalar_prefetch = 0 : i64, scratch_operands = 0 : i64, tpu.core_type = #tpu.core_type<tc>, window_params = [{transform_indices = @transform_0, window_bounds = array<i64: 16, 32>}, {pipeline_mode = #tpu.pipeline_mode<synchronous>, transform_indices = @transform_1, window_bounds = array<i64: 32, 128>}, {pipeline_mode = #tpu.pipeline_mode<synchronous>, transform_indices = @transform_2, window_bounds = array<i64: 1, 128>}, {pipeline_mode = #tpu.pipeline_mode<synchronous>, transform_indices = @transform_3, window_bounds = array<i64: 128, 128>}, {pipeline_mode = #tpu.pipeline_mode<synchronous>, transform_indices = @transform_4, window_bounds = array<i64: 1, 128>}, {pipeline_mode = #tpu.pipeline_mode<synchronous>, transform_indices = @transform_5, window_bounds = array<i64: 128, 128>}, {pipeline_mode = #tpu.pipeline_mode<synchronous>, transform_indices = @transform_6, window_bounds = array<i64: 1, 128>}, {pipeline_mode = #tpu.pipeline_mode<synchronous>, transform_indices = @transform_7, window_bounds = array<i64: 128, 32>}, {pipeline_mode = #tpu.pipeline_mode<synchronous>, transform_indices = @transform_8, window_bounds = array<i64: 1, 32>}, {transform_indices = @transform_9, window_bounds = array<i64: 16, 32>}]} {
    %c0 = arith.constant 0 : index
    %c0_0 = arith.constant 0 : index
    %0 = vector.load %arg1[%c0, %c0_0] : memref<16x32xbf16, #tpu.memory_space<vmem>>, vector<16x32xbf16>
    %c0_1 = arith.constant 0 : index
    %c0_2 = arith.constant 0 : index
    %1 = vector.load %arg2[%c0_1, %c0_2] : memref<32x128xbf16, #tpu.memory_space<vmem>>, vector<32x128xbf16>
    %cst = arith.constant dense<0.000000e+00> : vector<16x128xf32>
    %2 = tpu.matmul %0, %1, %cst {dimension_numbers = #tpu.dot_dimension_numbers<[1], [0], [0], [1], [0, 0, 1, 1], [], []>} : vector<16x32xbf16>, vector<32x128xbf16>, vector<16x128xf32> -> vector<16x128xf32>
    %c0_3 = arith.constant 0 : index
    %c0_4 = arith.constant 0 : index
    %3 = vector.load %arg3[%c0_3, %c0_4] : memref<1x128xf32, #tpu.memory_space<vmem>>, vector<1x128xf32>
    %4 = vector.broadcast %3 : vector<1x128xf32> to vector<16x128xf32>
    %5 = arith.addf %2, %4 : vector<16x128xf32>
    %6 = arith.truncf %5 : vector<16x128xf32> to vector<16x128xbf16>
    %c0_5 = arith.constant 0 : index
    %c0_6 = arith.constant 0 : index
    %7 = vector.load %arg6[%c0_5, %c0_6] : memref<128x128xbf16, #tpu.memory_space<vmem>>, vector<128x128xbf16>
    %cst_7 = arith.constant dense<0.000000e+00> : vector<16x128xf32>
    %8 = tpu.matmul %6, %7, %cst_7 {dimension_numbers = #tpu.dot_dimension_numbers<[1], [0], [0], [1], [0, 0, 1, 1], [], []>} : vector<16x128xbf16>, vector<128x128xbf16>, vector<16x128xf32> -> vector<16x128xf32>
    %c0_8 = arith.constant 0 : index
    %c0_9 = arith.constant 0 : index
    %9 = vector.load %arg7[%c0_8, %c0_9] : memref<1x128xf32, #tpu.memory_space<vmem>>, vector<1x128xf32>
    %10 = vector.broadcast %9 : vector<1x128xf32> to vector<16x128xf32>
    %11 = arith.addf %8, %10 : vector<16x128xf32>
    %12 = arith.negf %11 : vector<16x128xf32>
    %13 = math.exp %12 : vector<16x128xf32>
    %cst_10 = arith.constant 1.000000e+00 : f32
    %14 = vector.broadcast %cst_10 : f32 to vector<16x128xf32>
    %15 = arith.addf %14, %13 : vector<16x128xf32>
    %16 = arith.divf %14, %15 : vector<16x128xf32>
    %17 = arith.mulf %11, %16 : vector<16x128xf32>
    %c0_11 = arith.constant 0 : index
    %c0_12 = arith.constant 0 : index
    %18 = vector.load %arg4[%c0_11, %c0_12] : memref<128x128xbf16, #tpu.memory_space<vmem>>, vector<128x128xbf16>
    %cst_13 = arith.constant dense<0.000000e+00> : vector<16x128xf32>
    %19 = tpu.matmul %6, %18, %cst_13 {dimension_numbers = #tpu.dot_dimension_numbers<[1], [0], [0], [1], [0, 0, 1, 1], [], []>} : vector<16x128xbf16>, vector<128x128xbf16>, vector<16x128xf32> -> vector<16x128xf32>
    %c0_14 = arith.constant 0 : index
    %c0_15 = arith.constant 0 : index
    %20 = vector.load %arg5[%c0_14, %c0_15] : memref<1x128xf32, #tpu.memory_space<vmem>>, vector<1x128xf32>
    %21 = vector.broadcast %20 : vector<1x128xf32> to vector<16x128xf32>
    %22 = arith.addf %19, %21 : vector<16x128xf32>
    %23 = arith.mulf %22, %17 : vector<16x128xf32>
    %24 = arith.truncf %23 : vector<16x128xf32> to vector<16x128xbf16>
    %c0_16 = arith.constant 0 : index
    %c0_17 = arith.constant 0 : index
    %25 = vector.load %arg8[%c0_16, %c0_17] : memref<128x32xbf16, #tpu.memory_space<vmem>>, vector<128x32xbf16>
    %cst_18 = arith.constant dense<0.000000e+00> : vector<16x32xf32>
    %26 = tpu.matmul %24, %25, %cst_18 {dimension_numbers = #tpu.dot_dimension_numbers<[1], [0], [0], [1], [0, 0, 1, 1], [], []>} : vector<16x128xbf16>, vector<128x32xbf16>, vector<16x32xf32> -> vector<16x32xf32>
    %c0_19 = arith.constant 0 : index
    %c0_20 = arith.constant 0 : index
    %27 = vector.load %arg9[%c0_19, %c0_20] : memref<1x32xf32, #tpu.memory_space<vmem>>, vector<1x32xf32>
    %28 = vector.broadcast %27 : vector<1x32xf32> to vector<16x32xf32>
    %29 = arith.addf %26, %28 : vector<16x32xf32>
    %30 = arith.truncf %29 : vector<16x32xf32> to vector<16x32xbf16>
    %c0_21 = arith.constant 0 : index
    %c0_22 = arith.constant 0 : index
    %31 = vector.load %arg10[%c0_21, %c0_22] : memref<16x32xbf16, #tpu.memory_space<vmem>>, vector<16x32xbf16>
    tpu.vector_store %arg10[%c0_21, %c0_22], %30 {strides = array<i32>} : memref<16x32xbf16, #tpu.memory_space<vmem>>, vector<16x32xbf16>,
    return
  }
  func.func @transform_0(%arg0: i32) -> (i32, i32) {
    %c0_i32 = arith.constant 0 : i32
    %c0_i32_0 = arith.constant 0 : i32
    return %arg0, %c0_i32 : i32, i32
  }
  func.func @transform_1(%arg0: i32) -> (i32, i32) {
    %c0_i32 = arith.constant 0 : i32
    %c0_i32_0 = arith.constant 0 : i32
    %c0_i32_1 = arith.constant 0 : i32
    return %c0_i32, %c0_i32_0 : i32, i32
  }
  func.func @transform_2(%arg0: i32) -> (i32, i32) {
    %c0_i32 = arith.constant 0 : i32
    %c0_i32_0 = arith.constant 0 : i32
    %c0_i32_1 = arith.constant 0 : i32
    return %c0_i32, %c0_i32_0 : i32, i32
  }
  func.func @transform_3(%arg0: i32) -> (i32, i32) {
    %c0_i32 = arith.constant 0 : i32
    %c0_i32_0 = arith.constant 0 : i32
    %c0_i32_1 = arith.constant 0 : i32
    return %c0_i32, %c0_i32_0 : i32, i32
  }
  func.func @transform_4(%arg0: i32) -> (i32, i32) {
    %c0_i32 = arith.constant 0 : i32
    %c0_i32_0 = arith.constant 0 : i32
    %c0_i32_1 = arith.constant 0 : i32
    return %c0_i32, %c0_i32_0 : i32, i32
  }
  func.func @transform_5(%arg0: i32) -> (i32, i32) {
    %c0_i32 = arith.constant 0 : i32
    %c0_i32_0 = arith.constant 0 : i32
    %c0_i32_1 = arith.constant 0 : i32
    return %c0_i32, %c0_i32_0 : i32, i32
  }
  func.func @transform_6(%arg0: i32) -> (i32, i32) {
    %c0_i32 = arith.constant 0 : i32
    %c0_i32_0 = arith.constant 0 : i32
    %c0_i32_1 = arith.constant 0 : i32
    return %c0_i32, %c0_i32_0 : i32, i32
  }
  func.func @transform_7(%arg0: i32) -> (i32, i32) {
    %c0_i32 = arith.constant 0 : i32
    %c0_i32_0 = arith.constant 0 : i32
    %c0_i32_1 = arith.constant 0 : i32
    return %c0_i32, %c0_i32_0 : i32, i32
  }
  func.func @transform_8(%arg0: i32) -> (i32, i32) {
    %c0_i32 = arith.constant 0 : i32
    %c0_i32_0 = arith.constant 0 : i32
    %c0_i32_1 = arith.constant 0 : i32
    return %c0_i32, %c0_i32_0 : i32, i32
  }
  func.func @transform_9(%arg0: i32) -> (i32, i32) {
    %c0_i32 = arith.constant 0 : i32
    %c0_i32_0 = arith.constant 0 : i32
    return %arg0, %c0_i32 : i32, i32
  }
}

module attributes {stable_mosaic.version = 11 : i64} {
  func.func @_mlp_resident_kernel(%arg0: i32, %arg1: memref<16x32xbf16, #tpu.memory_space<vmem>>, %arg2: memref<32x128xbf16, #tpu.memory_space<vmem>>, %arg3: memref<1x128xf32, #tpu.memory_space<vmem>>, %arg4: memref<128x128xbf16, #tpu.memory_space<vmem>>, %arg5: memref<1x128xf32, #tpu.memory_space<vmem>>, %arg6: memref<128x128xbf16, #tpu.memory_space<vmem>>, %arg7: memref<1x128xf32, #tpu.memory_space<vmem>>, %arg8: memref<128x32xbf16, #tpu.memory_space<vmem>>, %arg9: memref<1x32xf32, #tpu.memory_space<vmem>>, %arg10: memref<16x32xbf16, #tpu.memory_space<vmem>>) attributes {dimension_semantics = [#tpu.dimension_semantics<parallel>], iteration_bounds = array<i64: 1>, scalar_prefetch = 0 : i64, scratch_operands = 0 : i64, tpu.core_type = #tpu.core_type<tc>, window_params = [{transform_indices = @transform_0, window_bounds = array<i64: 16, 32>}, {pipeline_mode = #tpu.pipeline_mode<synchronous>, transform_indices = @transform_1, window_bounds = array<i64: 32, 128>}, {pipeline_mode = #tpu.pipeline_mode<synchronous>, transform_indices = @transform_2, window_bounds = array<i64: 1, 128>}, {pipeline_mode = #tpu.pipeline_mode<synchronous>, transform_indices = @transform_3, window_bounds = array<i64: 128, 128>}, {pipeline_mode = #tpu.pipeline_mode<synchronous>, transform_indices = @transform_4, window_bounds = array<i64: 1, 128>}, {pipeline_mode = #tpu.pipeline_mode<synchronous>, transform_indices = @transform_5, window_bounds = array<i64: 128, 128>}, {pipeline_mode = #tpu.pipeline_mode<synchronous>, transform_indices = @transform_6, window_bounds = array<i64: 1, 128>}, {pipeline_mode = #tpu.pipeline_mode<synchronous>, transform_indices = @transform_7, window_bounds = array<i64: 128, 32>}, {pipeline_mode = #tpu.pipeline_mode<synchronous>, transform_indices = @transform_8, window_bounds = array<i64: 1, 32>}, {transform_indices = @transform_9, window_bounds = array<i64: 16, 32>}]} {
    %c0 = arith.constant 0 : index
    %c0_0 = arith.constant 0 : index
    %0 = vector.load %arg1[%c0, %c0_0] : memref<16x32xbf16, #tpu.memory_space<vmem>>, vector<16x32xbf16>
    %c0_1 = arith.constant 0 : index
    %c0_2 = arith.constant 0 : index
    %1 = vector.load %arg2[%c0_1, %c0_2] : memref<32x128xbf16, #tpu.memory_space<vmem>>, vector<32x128xbf16>
    %cst = arith.constant dense<0.000000e+00> : vector<16x128xf32>
    %2 = tpu.matmul %0, %1, %cst {dimension_numbers = #tpu.dot_dimension_numbers<[1], [0], [0], [1], [0, 0, 1, 1], [], []>} : vector<16x32xbf16>, vector<32x128xbf16>, vector<16x128xf32> -> vector<16x128xf32>
    %c0_3 = arith.constant 0 : index
    %c0_4 = arith.constant 0 : index
    %3 = vector.load %arg3[%c0_3, %c0_4] : memref<1x128xf32, #tpu.memory_space<vmem>>, vector<1x128xf32>
    %4 = vector.broadcast %3 : vector<1x128xf32> to vector<16x128xf32>
    %5 = arith.addf %2, %4 : vector<16x128xf32>
    %6 = arith.truncf %5 : vector<16x128xf32> to vector<16x128xbf16>
    %c0_5 = arith.constant 0 : index
    %c0_6 = arith.constant 0 : index
    %7 = vector.load %arg6[%c0_5, %c0_6] : memref<128x128xbf16, #tpu.memory_space<vmem>>, vector<128x128xbf16>
    %cst_7 = arith.constant dense<0.000000e+00> : vector<16x128xf32>
    %8 = tpu.matmul %6, %7, %cst_7 {dimension_numbers = #tpu.dot_dimension_numbers<[1], [0], [0], [1], [0, 0, 1, 1], [], []>} : vector<16x128xbf16>, vector<128x128xbf16>, vector<16x128xf32> -> vector<16x128xf32>
    %c0_8 = arith.constant 0 : index
    %c0_9 = arith.constant 0 : index
    %9 = vector.load %arg7[%c0_8, %c0_9] : memref<1x128xf32, #tpu.memory_space<vmem>>, vector<1x128xf32>
    %10 = vector.broadcast %9 : vector<1x128xf32> to vector<16x128xf32>
    %11 = arith.addf %8, %10 : vector<16x128xf32>
    %12 = arith.negf %11 : vector<16x128xf32>
    %13 = math.exp %12 : vector<16x128xf32>
    %cst_10 = arith.constant 1.000000e+00 : f32
    %14 = vector.broadcast %cst_10 : f32 to vector<16x128xf32>
    %15 = arith.addf %14, %13 : vector<16x128xf32>
    %16 = arith.divf %14, %15 : vector<16x128xf32>
    %17 = arith.mulf %11, %16 : vector<16x128xf32>
    %c0_11 = arith.constant 0 : index
    %c0_12 = arith.constant 0 : index
    %18 = vector.load %arg4[%c0_11, %c0_12] : memref<128x128xbf16, #tpu.memory_space<vmem>>, vector<128x128xbf16>
    %cst_13 = arith.constant dense<0.000000e+00> : vector<16x128xf32>
    %19 = tpu.matmul %6, %18, %cst_13 {dimension_numbers = #tpu.dot_dimension_numbers<[1], [0], [0], [1], [0, 0, 1, 1], [], []>} : vector<16x128xbf16>, vector<128x128xbf16>, vector<16x128xf32> -> vector<16x128xf32>
    %c0_14 = arith.constant 0 : index
    %c0_15 = arith.constant 0 : index
    %20 = vector.load %arg5[%c0_14, %c0_15] : memref<1x128xf32, #tpu.memory_space<vmem>>, vector<1x128xf32>
    %21 = vector.broadcast %20 : vector<1x128xf32> to vector<16x128xf32>
    %22 = arith.addf %19, %21 : vector<16x128xf32>
    %23 = arith.mulf %22, %17 : vector<16x128xf32>
    %24 = arith.truncf %23 : vector<16x128xf32> to vector<16x128xbf16>
    %c0_16 = arith.constant 0 : index
    %c0_17 = arith.constant 0 : index
    %25 = vector.load %arg8[%c0_16, %c0_17] : memref<128x32xbf16, #tpu.memory_space<vmem>>, vector<128x32xbf16>
    %cst_18 = arith.constant dense<0.000000e+00> : vector<16x32xf32>
    %26 = tpu.matmul %24, %25, %cst_18 {dimension_numbers = #tpu.dot_dimension_numbers<[1], [0], [0], [1], [0, 0, 1, 1], [], []>} : vector<16x128xbf16>, vector<128x32xbf16>, vector<16x32xf32> -> vector<16x32xf32>
    %c0_19 = arith.constant 0 : index
    %c0_20 = arith.constant 0 : index
    %27 = vector.load %arg9[%c0_19, %c0_20] : memref<1x32xf32, #tpu.memory_space<vmem>>, vector<1x32xf32>
    %28 = vector.broadcast %27 : vector<1x32xf32> to vector<16x32xf32>
    %29 = arith.addf %26, %28 : vector<16x32xf32>
    %30 = arith.truncf %29 : vector<16x32xf32> to vector<16x32xbf16>
    %c0_21 = arith.constant 0 : index
    %c0_22 = arith.constant 0 : index
    %31 = vector.load %arg10[%c0_21, %c0_22] : memref<16x32xbf16, #tpu.memory_space<vmem>>, vector<16x32xbf16>
    tpu.vector_store %arg10[%c0_21, %c0_22], %30 {strides = array<i32>} : memref<16x32xbf16, #tpu.memory_space<vmem>>, vector<16x32xbf16>,
    return
  }
  func.func @transform_0(%arg0: i32) -> (i32, i32) {
    %c0_i32 = arith.constant 0 : i32
    %c0_i32_0 = arith.constant 0 : i32
    return %arg0, %c0_i32 : i32, i32
  }
  func.func @transform_1(%arg0: i32) -> (i32, i32) {
    %c0_i32 = arith.constant 0 : i32
    %c0_i32_0 = arith.constant 0 : i32
    %c0_i32_1 = arith.constant 0 : i32
    return %c0_i32, %c0_i32_0 : i32, i32
  }
  func.func @transform_2(%arg0: i32) -> (i32, i32) {
    %c0_i32 = arith.constant 0 : i32
    %c0_i32_0 = arith.constant 0 : i32
    %c0_i32_1 = arith.constant 0 : i32
    return %c0_i32, %c0_i32_0 : i32, i32
  }
  func.func @transform_3(%arg0: i32) -> (i32, i32) {
    %c0_i32 = arith.constant 0 : i32
    %c0_i32_0 = arith.constant 0 : i32
    %c0_i32_1 = arith.constant 0 : i32
    return %c0_i32, %c0_i32_0 : i32, i32
  }
  func.func @transform_4(%arg0: i32) -> (i32, i32) {
    %c0_i32 = arith.constant 0 : i32
    %c0_i32_0 = arith.constant 0 : i32
    %c0_i32_1 = arith.constant 0 : i32
    return %c0_i32, %c0_i32_0 : i32, i32
  }
  func.func @transform_5(%arg0: i32) -> (i32, i32) {
    %c0_i32 = arith.constant 0 : i32
    %c0_i32_0 = arith.constant 0 : i32
    %c0_i32_1 = arith.constant 0 : i32
    return %c0_i32, %c0_i32_0 : i32, i32
  }
  func.func @transform_6(%arg0: i32) -> (i32, i32) {
    %c0_i32 = arith.constant 0 : i32
    %c0_i32_0 = arith.constant 0 : i32
    %c0_i32_1 = arith.constant 0 : i32
    return %c0_i32, %c0_i32_0 : i32, i32
  }
  func.func @transform_7(%arg0: i32) -> (i32, i32) {
    %c0_i32 = arith.constant 0 : i32
    %c0_i32_0 = arith.constant 0 : i32
    %c0_i32_1 = arith.constant 0 : i32
    return %c0_i32, %c0_i32_0 : i32, i32
  }
  func.func @transform_8(%arg0: i32) -> (i32, i32) {
    %c0_i32 = arith.constant 0 : i32
    %c0_i32_0 = arith.constant 0 : i32
    %c0_i32_1 = arith.constant 0 : i32
    return %c0_i32, %c0_i32_0 : i32, i32
  }
  func.func @transform_9(%arg0: i32) -> (i32, i32) {
    %c0_i32 = arith.constant 0 : i32
    %c0_i32_0 = arith.constant 0 : i32
    return %arg0, %c0_i32 : i32, i32
  }
}

</mosaic_0001>

<llo_original>
// kernel: tpu_custom_call.1
$region0: #{tpu_custom_call.1}
  #allocation0 [shape = 'u32[]', space=smem, size = 0x4, offset = 0x4, fixed_abs, tag = 'smem constant byte address 0x4 - core index']
  #allocation1 [shape = 'u32[144,128]{1,0:T(1,128)}', space=vmem, size = 0x12000, scoped, tag = 'internal scratch']
  %s0 = inlined_call_operand.hbm [shape: bf16[16,32], index: 0, kind: input, shape index: {}]
  %s1 = inlined_call_operand.vmem [shape: bf16[32,128], index: 1, kind: input, shape index: {}]
  %s2 = inlined_call_operand.vmem [shape: f32[1,128], index: 2, kind: input, shape index: {}]
  %s3 = inlined_call_operand.vmem [shape: bf16[128,128], index: 3, kind: input, shape index: {}]
  %s4 = inlined_call_operand.vmem [shape: f32[1,128], index: 4, kind: input, shape index: {}]
  %s5 = inlined_call_operand.hbm [shape: bf16[128,128], index: 5, kind: input, shape index: {}]
  %s6 = inlined_call_operand.vmem [shape: f32[1,128], index: 6, kind: input, shape index: {}]
  %s7 = inlined_call_operand.vmem [shape: bf16[128,32], index: 7, kind: input, shape index: {}]
  %s8 = inlined_call_operand.vmem [shape: f32[1,32], index: 8, kind: input, shape index: {}]
  %s9 = inlined_call_operand.hbm [shape: bf16[16,32], index: 9, kind: output, shape index: {}]
  %s10 = sld [smem:[#allocation0]]
  $region54: #{tpu_custom_call.1} parent=0
    _
  %s12 = ssub.s32 1, %s10
  %s13 = scalar_select 0, %s12, %s10
  $region1: #{tpu_custom_call.1} parent=0
    #allocation2 [shape = 'u8[4096]{0}', space=vmem, size = 0x1000, scoped, tag = 'input window, operand 0, single buffered']
    #allocation3 [shape = 's32[1]{0}', space=sflag, size = 0x4, scoped, tag = 'scoped memory for tpu_custom_call.1']
    #allocation4 [shape = 's32[1]{0}', space=sflag, size = 0x4, scoped, tag = 'scoped memory for tpu_custom_call.1']
    #allocation5 [shape = 'u8[32768]{0}', space=vmem, size = 0x8000, scoped, tag = 'input window, operand 5, single buffered']
    #allocation6 [shape = 's32[1]{0}', space=sflag, size = 0x4, scoped, tag = 'scoped memory for tpu_custom_call.1']
    #allocation7 [shape = 'u8[4096]{0}', space=vmem, size = 0x1000, scoped, tag = 'output window, operand 0, single buffered']
    %14 = vsyncpa [#allocation3], 0
    %15 = vsyncpa [#allocation6], 0
    %16 = vsyncpa [#allocation4], 0
    // Predicated region
    $region2: #{tpu_custom_call.1} parent=1 // pred_check
      _
    $region3: #{tpu_custom_call.1} parent=1 // pred_check_branch
      %18 = sbr.rel (0) target = $region5
    $region4: #{tpu_custom_call.1} parent=1 // pred_region
      %s20 = ssub.s32 128, 128
      %21 = vsyncadd [#allocation3], %s20
      %s22 = sshll.u32 [#allocation2], 4
      %s23 = int_to_ptr.vmem [resolvable:$true] %s22
      %28 = dma.hbm_to_vmem [thread:$0]  %s0, 128, %s23, [#allocation3], 64, 64, 4
    $region5: #{tpu_custom_call.1} parent=1 // pred_fallthru
      _
    // Predicated region
    $region6: #{tpu_custom_call.1} parent=1 // pred_check
      _
    $region7: #{tpu_custom_call.1} parent=1 // pred_check_branch
      %30 = sbr.rel (0) target = $region9
    $region8: #{tpu_custom_call.1} parent=1 // pred_region
      _
    $region9: #{tpu_custom_call.1} parent=1 // pred_fallthru
      _
    // Predicated region
    $region10: #{tpu_custom_call.1} parent=1 // pred_check
      _
    $region11: #{tpu_custom_call.1} parent=1 // pred_check_branch
      %32 = sbr.rel (0) target = $region13
    $region12: #{tpu_custom_call.1} parent=1 // pred_region
      _
    $region13: #{tpu_custom_call.1} parent=1 // pred_fallthru
      _
    // Predicated region
    $region14: #{tpu_custom_call.1} parent=1 // pred_check
      _
    $region15: #{tpu_custom_call.1} parent=1 // pred_check_branch
      %34 = sbr.rel (0) target = $region17
    $region16: #{tpu_custom_call.1} parent=1 // pred_region
      _
    $region17: #{tpu_custom_call.1} parent=1 // pred_fallthru
      _
    // Predicated region
    $region18: #{tpu_custom_call.1} parent=1 // pred_check
      _
    $region19: #{tpu_custom_call.1} parent=1 // pred_check_branch
      %36 = sbr.rel (0) target = $region21
    $region20: #{tpu_custom_call.1} parent=1 // pred_region
      _
    $region21: #{tpu_custom_call.1} parent=1 // pred_fallthru
      _
    // Predicated region
    $region22: #{tpu_custom_call.1} parent=1 // pred_check
      _
    $region23: #{tpu_custom_call.1} parent=1 // pred_check_branch
      %38 = sbr.rel (0) target = $region25
    $region24: #{tpu_custom_call.1} parent=1 // pred_region
      %s40 = ssub.s32 1024, 1024
      %41 = vsyncadd [#allocation6], %s40
      %s42 = sshll.u32 [#allocation5], 4
      %s43 = int_to_ptr.vmem [resolvable:$true] %s42
      %48 = dma.hbm_to_vmem [thread:$0]  %s5, 1024, %s43, [#allocation6], 64, 64, 4
    $region25: #{tpu_custom_call.1} parent=1 // pred_fallthru
      _
    // Predicated region
    $region26: #{tpu_custom_call.1} parent=1 // pred_check
      _
    $region27: #{tpu_custom_call.1} parent=1 // pred_check_branch
      %50 = sbr.rel (0) target = $region29
    $region28: #{tpu_custom_call.1} parent=1 // pred_region
      _
    $region29: #{tpu_custom_call.1} parent=1 // pred_fallthru
      _
    // Predicated region
    $region30: #{tpu_custom_call.1} parent=1 // pred_check
      _
    $region31: #{tpu_custom_call.1} parent=1 // pred_check_branch
      %52 = sbr.rel (0) target = $region33
    $region32: #{tpu_custom_call.1} parent=1 // pred_region
      _
    $region33: #{tpu_custom_call.1} parent=1 // pred_fallthru
      _
    // Predicated region
    $region34: #{tpu_custom_call.1} parent=1 // pred_check
      _
    $region35: #{tpu_custom_call.1} parent=1 // pred_check_branch
      %54 = sbr.rel (0) target = $region37
    $region36: #{tpu_custom_call.1} parent=1 // pred_region
      _
    $region37: #{tpu_custom_call.1} parent=1 // pred_fallthru
      _
    // Predicated region
    $region38: #{tpu_custom_call.1} parent=1 // pred_check
      _
    $region39: #{tpu_custom_call.1} parent=1 // pred_check_branch
      %56 = sbr.rel (0) target = $region41
    $region40: #{tpu_custom_call.1} parent=1 // pred_region
      %57 = dma.done [#allocation3], 128
    $region41: #{tpu_custom_call.1} parent=1 // pred_fallthru
      _
    // Predicated region
    $region42: #{tpu_custom_call.1} parent=1 // pred_check
      _
    $region43: #{tpu_custom_call.1} parent=1 // pred_check_branch
      %59 = sbr.rel (0) target = $region45
    $region44: #{tpu_custom_call.1} parent=1 // pred_region
      %60 = dma.done [#allocation6], 1024
    $region45: #{tpu_custom_call.1} parent=1 // pred_fallthru
      _
    %v62 = vld [vmem:[#allocation2] sm:$0xf]
    %v63 = vld [vmem:[#allocation2 + $0x4] sm:$0xf]
    %v64 = vld [vmem:[%s1] sm:$0xf]
    %v65 = vld [vmem:[%s1 + $0x4] sm:$0xf]
    %v66 = vld [vmem:[%s1 + $0x8] sm:$0xf]
    %v67 = vld [vmem:[%s1 + $0xc] sm:$0xf]
    %v68 = vld [vmem:[%s2] sm:$0x1]
    %v70 = vlaneseq
    %v71 = vshrl.u32 %v70, 7
    %v72 = vsub.s32 0, %v71
    %v73 = vrot.slane %v68, %v72
    %v77 = vunpack.c.l.b16 %v62
    %v78 = vunpack.c.l.b16 %v63
    %v79 = vpack.c.b16 %v78, %v77
    %v84 = vunpack.c.l.b16 %v64
    %v85 = vunpack.c.l.b16 %v65
    %v86 = vunpack.c.l.b16 %v66
    %v87 = vunpack.c.l.b16 %v67
    %v88 = vpack.c.b16 %v85, %v84
    %v89 = vpack.c.b16 %v87, %v86
    %vm92 = vcmask 261120
    %v94 = vsel %vm92, %v79, 0
    %96 = vmatprep.subr.bf16.mxu0 0
    %97 = vmatpush1.bf16.msra.mxu0 0
    %98 = vmatprep.subr.bf16.mxu0 0
    %99 = vmatpush1.bf16.msra.mxu0 0
    %100 = vmatprep.subr.bf16.mxu0 0
    %101 = vmatpush1.bf16.msra.mxu0 0
    %102 = vmatprep.subr.bf16.mxu0 0
    %103 = vmatpush1.bf16.msra.mxu0 0
    %104 = vmatprep.subr.bf16.mxu0 0
    %105 = vmatpush1.bf16.msra.mxu0 0
    %106 = vmatprep.subr.bf16.mxu0 0
    %107 = vmatpush1.bf16.msra.mxu0 0
    %108 = vmatprep.subr.bf16.mxu0 0
    %109 = vmatpush1.bf16.msra.mxu0 %v89
    %110 = vmatprep.subr.bf16.mxu0 0
    %111 = vmatpush1.bf16.msra.mxu0 %v88
    %112 = vmatprep.subr.bf16.mxu0 0
    %113 = vmatpush2.bf16.msra.mxu0 0
    %114 = vmatprep.subr.bf16.mxu0 0
    %115 = vmatpush2.bf16.msra.mxu0 0
    %116 = vmatprep.subr.bf16.mxu0 0
    %117 = vmatpush2.bf16.msra.mxu0 0
    %118 = vmatprep.subr.bf16.mxu0 0
    %119 = vmatpush2.bf16.msra.mxu0 0
    %120 = vmatprep.subr.bf16.mxu0 0
    %121 = vmatpush2.bf16.msra.mxu0 0
    %122 = vmatprep.subr.bf16.mxu0 0
    %123 = vmatpush2.bf16.msra.mxu0 0
    %124 = vmatprep.subr.bf16.mxu0 0
    %125 = vmatpush2.bf16.msra.mxu0 0
    %126 = vmatprep.subr.bf16.mxu0 0
    %127 = vmatpush2.bf16.msra.mxu0 0
    %128 = vmatprep.mubr.bf16.mxu0 0
    %129 = vmatmul.mubr.bf16.gmra.mxu0 %v94
    %v130 = vpop.f32.mrf.mxu0
    %v131 = vadd.f32 %v73, %v130
    %v132 = vpop.f32.mrf.mxu0
    %v133 = vpop.f32.mrf.mxu0
    %v134 = vadd.f32 %v73, %v133
    %v135 = vpop.f32.mrf.mxu0
    %136 = vdwg.mxu0
    %v137 = vpack.c.bf16 %v134, %v131
    %v138 = vld [vmem:[#allocation5] sm:$0xf]
    %v139 = vld [vmem:[#allocation5 + $0x4] sm:$0xf]
    %v140 = vld [vmem:[#allocation5 + $0x8] sm:$0xf]
    %v141 = vld [vmem:[#allocation5 + $0xc] sm:$0xf]
    %v142 = vld [vmem:[#allocation5 + $0x10] sm:$0xf]
    %v143 = vld [vmem:[#allocation5 + $0x14] sm:$0xf]
    %v144 = vld [vmem:[#allocation5 + $0x18] sm:$0xf]
    %v145 = vld [vmem:[#allocation5 + $0x1c] sm:$0xf]
    %v146 = vld [vmem:[#allocation5 + $0x20] sm:$0xf]
    %v147 = vld [vmem:[#allocation5 + $0x24] sm:$0xf]
    %v148 = vld [vmem:[#allocation5 + $0x28] sm:$0xf]
    %v149 = vld [vmem:[#allocation5 + $0x2c] sm:$0xf]
    %v150 = vld [vmem:[#allocation5 + $0x30] sm:$0xf]
    %v151 = vld [vmem:[#allocation5 + $0x34] sm:$0xf]
    %v152 = vld [vmem:[#allocation5 + $0x38] sm:$0xf]
    %v153 = vld [vmem:[#allocation5 + $0x3c] sm:$0xf]
    %v154 = vld [vmem:[%s6] sm:$0x1]
    %v156 = vlaneseq
    %v157 = vshrl.u32 %v156, 7
    %v158 = vsub.s32 0, %v157
    %v159 = vrot.slane %v154, %v158
    %v177 = vunpack.c.l.b16 %v138
    %v178 = vunpack.c.l.b16 %v139
    %v179 = vunpack.c.l.b16 %v140
    %v180 = vunpack.c.l.b16 %v141
    %v181 = vunpack.c.l.b16 %v142
    %v182 = vunpack.c.l.b16 %v143
    %v183 = vunpack.c.l.b16 %v144
    %v184 = vunpack.c.l.b16 %v145
    %v185 = vunpack.c.l.b16 %v146
    %v186 = vunpack.c.l.b16 %v147
    %v187 = vunpack.c.l.b16 %v148
    %v188 = vunpack.c.l.b16 %v149
    %v189 = vunpack.c.l.b16 %v150
    %v190 = vunpack.c.l.b16 %v151
    %v191 = vunpack.c.l.b16 %v152
    %v192 = vunpack.c.l.b16 %v153
    %v193 = vpack.c.b16 %v178, %v177
    %v194 = vpack.c.b16 %v180, %v179
    %v195 = vpack.c.b16 %v182, %v181
    %v196 = vpack.c.b16 %v184, %v183
    %v197 = vpack.c.b16 %v186, %v185
    %v198 = vpack.c.b16 %v188, %v187
    %v199 = vpack.c.b16 %v190, %v189
    %v200 = vpack.c.b16 %v192, %v191
    %209 = vmatprep.subr.bf16.mxu0 0
    %210 = vmatpush1.bf16.msra.mxu0 %v200
    %211 = vmatprep.subr.bf16.mxu0 0
    %212 = vmatpush1.bf16.msra.mxu0 %v199
    %213 = vmatprep.subr.bf16.mxu0 0
    %214 = vmatpush1.bf16.msra.mxu0 %v198
    %215 = vmatprep.subr.bf16.mxu0 0
    %216 = vmatpush1.bf16.msra.mxu0 %v197
    %217 = vmatprep.subr.bf16.mxu0 0
    %218 = vmatpush1.bf16.msra.mxu0 %v196
    %219 = vmatprep.subr.bf16.mxu0 0
    %220 = vmatpush1.bf16.msra.mxu0 %v195
    %221 = vmatprep.subr.bf16.mxu0 0
    %222 = vmatpush1.bf16.msra.mxu0 %v194
    %223 = vmatprep.subr.bf16.mxu0 0
    %224 = vmatpush1.bf16.msra.mxu0 %v193
    %225 = vmatprep.subr.bf16.mxu0 0
    %226 = vmatpush2.bf16.msra.mxu0 0
    %227 = vmatprep.subr.bf16.mxu0 0
    %228 = vmatpush2.bf16.msra.mxu0 0
    %229 = vmatprep.subr.bf16.mxu0 0
    %230 = vmatpush2.bf16.msra.mxu0 0
    %231 = vmatprep.subr.bf16.mxu0 0
    %232 = vmatpush2.bf16.msra.mxu0 0
    %233 = vmatprep.subr.bf16.mxu0 0
    %234 = vmatpush2.bf16.msra.mxu0 0
    %235 = vmatprep.subr.bf16.mxu0 0
    %236 = vmatpush2.bf16.msra.mxu0 0
    %237 = vmatprep.subr.bf16.mxu0 0
    %238 = vmatpush2.bf16.msra.mxu0 0
    %239 = vmatprep.subr.bf16.mxu0 0
    %240 = vmatpush2.bf16.msra.mxu0 0
    %241 = vmatprep.mubr.bf16.mxu0 0
    %242 = vmatmul.mubr.bf16.gmra.mxu0 %v137
    %v243 = vpop.f32.mrf.mxu0
    %v244 = vadd.f32 %v159, %v243
    %v245 = vpop.f32.mrf.mxu0
    %v246 = vpop.f32.mrf.mxu0
    %v247 = vadd.f32 %v159, %v246
    %v248 = vpop.f32.mrf.mxu0
    %249 = vdwg.mxu0
    %v250 = vxor.u32 %v244, 2147483648
    %v251 = vxor.u32 %v247, 2147483648
    %v252 = vmul.f32 %v250, 1.442695
    %v253 = vpow.pop %v252
    %v254 = vmul.f32 %v251, 1.442695
    %v255 = vpow.pop %v254
    %v256 = vadd.f32 %v253, 1.0
    %v257 = vadd.f32 %v255, 1.0
    %v258 = vrcp.pop %v256
    %v259 = vmul.f32 1.0, %v258
    %v260 = vrcp.pop %v257
    %v261 = vmul.f32 1.0, %v260
    %v262 = vmul.f32 %v244, %v259
    %v263 = vmul.f32 %v247, %v261
    %v264 = vld [vmem:[%s3] sm:$0xf]
    %v265 = vld [vmem:[%s3 + $0x4] sm:$0xf]
    %v266 = vld [vmem:[%s3 + $0x8] sm:$0xf]
    %v267 = vld [vmem:[%s3 + $0xc] sm:$0xf]
    %v268 = vld [vmem:[%s3 + $0x10] sm:$0xf]
    %v269 = vld [vmem:[%s3 + $0x14] sm:$0xf]
    %v270 = vld [vmem:[%s3 + $0x18] sm:$0xf]
    %v271 = vld [vmem:[%s3 + $0x1c] sm:$0xf]
    %v272 = vld [vmem:[%s3 + $0x20] sm:$0xf]
    %v273 = vld [vmem:[%s3 + $0x24] sm:$0xf]
    %v274 = vld [vmem:[%s3 + $0x28] sm:$0xf]
    %v275 = vld [vmem:[%s3 + $0x2c] sm:$0xf]
    %v276 = vld [vmem:[%s3 + $0x30] sm:$0xf]
    %v277 = vld [vmem:[%s3 + $0x34] sm:$0xf]
    %v278 = vld [vmem:[%s3 + $0x38] sm:$0xf]
    %v279 = vld [vmem:[%s3 + $0x3c] sm:$0xf]
    %v280 = vld [vmem:[%s4] sm:$0x1]
    %v282 = vlaneseq
    %v283 = vshrl.u32 %v282, 7
    %v284 = vsub.s32 0, %v283
    %v285 = vrot.slane %v280, %v284
    %v303 = vunpack.c.l.b16 %v264
    %v304 = vunpack.c.l.b16 %v265
    %v305 = vunpack.c.l.b16 %v266
    %v306 = vunpack.c.l.b16 %v267
    %v307 = vunpack.c.l.b16 %v268
    %v308 = vunpack.c.l.b16 %v269
    %v309 = vunpack.c.l.b16 %v270
    %v310 = vunpack.c.l.b16 %v271
    %v311 = vunpack.c.l.b16 %v272
    %v312 = vunpack.c.l.b16 %v273
    %v313 = vunpack.c.l.b16 %v274
    %v314 = vunpack.c.l.b16 %v275
    %v315 = vunpack.c.l.b16 %v276
    %v316 = vunpack.c.l.b16 %v277
    %v317 = vunpack.c.l.b16 %v278
    %v318 = vunpack.c.l.b16 %v279
    %v319 = vpack.c.b16 %v304, %v303
    %v320 = vpack.c.b16 %v306, %v305
    %v321 = vpack.c.b16 %v308, %v307
    %v322 = vpack.c.b16 %v310, %v309
    %v323 = vpack.c.b16 %v312, %v311
    %v324 = vpack.c.b16 %v314, %v313
    %v325 = vpack.c.b16 %v316, %v315
    %v326 = vpack.c.b16 %v318, %v317
    %335 = vmatprep.subr.bf16.mxu0 0
    %336 = vmatpush1.bf16.msra.mxu0 %v326
    %337 = vmatprep.subr.bf16.mxu0 0
    %338 = vmatpush1.bf16.msra.mxu0 %v325
    %339 = vmatprep.subr.bf16.mxu0 0
    %340 = vmatpush1.bf16.msra.mxu0 %v324
    %341 = vmatprep.subr.bf16.mxu0 0
    %342 = vmatpush1.bf16.msra.mxu0 %v323
    %343 = vmatprep.subr.bf16.mxu0 0
    %344 = vmatpush1.bf16.msra.mxu0 %v322
    %345 = vmatprep.subr.bf16.mxu0 0
    %346 = vmatpush1.bf16.msra.mxu0 %v321
    %347 = vmatprep.subr.bf16.mxu0 0
    %348 = vmatpush1.bf16.msra.mxu0 %v320
    %349 = vmatprep.subr.bf16.mxu0 0
    %350 = vmatpush1.bf16.msra.mxu0 %v319
    %351 = vmatprep.subr.bf16.mxu0 0
    %352 = vmatpush2.bf16.msra.mxu0 0
    %353 = vmatprep.subr.bf16.mxu0 0
    %354 = vmatpush2.bf16.msra.mxu0 0
    %355 = vmatprep.subr.bf16.mxu0 0
    %356 = vmatpush2.bf16.msra.mxu0 0
    %357 = vmatprep.subr.bf16.mxu0 0
    %358 = vmatpush2.bf16.msra.mxu0 0
    %359 = vmatprep.subr.bf16.mxu0 0
    %360 = vmatpush2.bf16.msra.mxu0 0
    %361 = vmatprep.subr.bf16.mxu0 0
    %362 = vmatpush2.bf16.msra.mxu0 0
    %363 = vmatprep.subr.bf16.mxu0 0
    %364 = vmatpush2.bf16.msra.mxu0 0
    %365 = vmatprep.subr.bf16.mxu0 0
    %366 = vmatpush2.bf16.msra.mxu0 0
    %367 = vmatprep.mubr.bf16.mxu0 0
    %368 = vmatmul.mubr.bf16.gmra.mxu0 %v137
    %v369 = vpop.f32.mrf.mxu0
    %v370 = vadd.f32 %v285, %v369
    %v371 = vpop.f32.mrf.mxu0
    %v372 = vpop.f32.mrf.mxu0
    %v373 = vadd.f32 %v285, %v372
    %v374 = vpop.f32.mrf.mxu0
    %375 = vdwg.mxu0
    %v376 = vmul.f32 %v370, %v262
    %v377 = vmul.f32 %v373, %v263
    %v378 = vpack.c.bf16 %v377, %v376
    %v379 = vld [vmem:[%s7] sm:$0xf]
    %v380 = vld [vmem:[%s7 + $0x4] sm:$0xf]
    %v381 = vld [vmem:[%s7 + $0x8] sm:$0xf]
    %v382 = vld [vmem:[%s7 + $0xc] sm:$0xf]
    %v383 = vld [vmem:[%s7 + $0x10] sm:$0xf]
    %v384 = vld [vmem:[%s7 + $0x14] sm:$0xf]
    %v385 = vld [vmem:[%s7 + $0x18] sm:$0xf]
    %v386 = vld [vmem:[%s7 + $0x1c] sm:$0xf]
    %v387 = vld [vmem:[%s7 + $0x20] sm:$0xf]
    %v388 = vld [vmem:[%s7 + $0x24] sm:$0xf]
    %v389 = vld [vmem:[%s7 + $0x28] sm:$0xf]
    %v390 = vld [vmem:[%s7 + $0x2c] sm:$0xf]
    %v391 = vld [vmem:[%s7 + $0x30] sm:$0xf]
    %v392 = vld [vmem:[%s7 + $0x34] sm:$0xf]
    %v393 = vld [vmem:[%s7 + $0x38] sm:$0xf]
    %v394 = vld [vmem:[%s7 + $0x3c] sm:$0xf]
    %v395 = vld [vmem:[%s8] sm:$0x1]
    %v397 = vlaneseq
    %v398 = vshrl.u32 %v397, 7
    %v399 = vsub.s32 0, %v398
    %v400 = vrot.slane %v395, %v399
    %v418 = vunpack.c.l.b16 %v379
    %v419 = vunpack.c.l.b16 %v380
    %v420 = vunpack.c.l.b16 %v381
    %v421 = vunpack.c.l.b16 %v382
    %v422 = vunpack.c.l.b16 %v383
    %v423 = vunpack.c.l.b16 %v384
    %v424 = vunpack.c.l.b16 %v385
    %v425 = vunpack.c.l.b16 %v386
    %v426 = vunpack.c.l.b16 %v387
    %v427 = vunpack.c.l.b16 %v388
    %v428 = vunpack.c.l.b16 %v389
    %v429 = vunpack.c.l.b16 %v390
    %v430 = vunpack.c.l.b16 %v391
    %v431 = vunpack.c.l.b16 %v392
    %v432 = vunpack.c.l.b16 %v393
    %v433 = vunpack.c.l.b16 %v394
    %v434 = vpack.c.b16 %v419, %v418
    %v435 = vpack.c.b16 %v421, %v420
    %v436 = vpack.c.b16 %v423, %v422
    %v437 = vpack.c.b16 %v425, %v424
    %v438 = vpack.c.b16 %v427, %v426
    %v439 = vpack.c.b16 %v429, %v428
    %v440 = vpack.c.b16 %v431, %v430
    %v441 = vpack.c.b16 %v433, %v432
    %450 = vmatprep.subr.bf16.mxu0 0
    %451 = vmatpush1.bf16.msra.mxu0 %v441
    %452 = vmatprep.subr.bf16.mxu0 0
    %453 = vmatpush1.bf16.msra.mxu0 %v440
    %454 = vmatprep.subr.bf16.mxu0 0
    %455 = vmatpush1.bf16.msra.mxu0 %v439
    %456 = vmatprep.subr.bf16.mxu0 0
    %457 = vmatpush1.bf16.msra.mxu0 %v438
    %458 = vmatprep.subr.bf16.mxu0 0
    %459 = vmatpush1.bf16.msra.mxu0 %v437
    %460 = vmatprep.subr.bf16.mxu0 0
    %461 = vmatpush1.bf16.msra.mxu0 %v436
    %462 = vmatprep.subr.bf16.mxu0 0
    %463 = vmatpush1.bf16.msra.mxu0 %v435
    %464 = vmatprep.subr.bf16.mxu0 0
    %465 = vmatpush1.bf16.msra.mxu0 %v434
    %466 = vmatprep.subr.bf16.mxu0 0
    %467 = vmatpush2.bf16.msra.mxu0 0
    %468 = vmatprep.subr.bf16.mxu0 0
    %469 = vmatpush2.bf16.msra.mxu0 0
    %470 = vmatprep.subr.bf16.mxu0 0
    %471 = vmatpush2.bf16.msra.mxu0 0
    %472 = vmatprep.subr.bf16.mxu0 0
    %473 = vmatpush2.bf16.msra.mxu0 0
    %474 = vmatprep.subr.bf16.mxu0 0
    %475 = vmatpush2.bf16.msra.mxu0 0
    %476 = vmatprep.subr.bf16.mxu0 0
    %477 = vmatpush2.bf16.msra.mxu0 0
    %478 = vmatprep.subr.bf16.mxu0 0
    %479 = vmatpush2.bf16.msra.mxu0 0
    %480 = vmatprep.subr.bf16.mxu0 0
    %481 = vmatpush2.bf16.msra.mxu0 0
    %482 = vmatprep.mubr.bf16.mxu0 0
    %483 = vmatmul.mubr.bf16.gmra.mxu0 %v378
    %v484 = vpop.f32.mrf.mxu0
    %v485 = vadd.f32 %v400, %v484
    %v486 = vpop.f32.mrf.mxu0
    %v487 = vpop.f32.mrf.mxu0
    %v488 = vadd.f32 %v400, %v487
    %v489 = vpop.f32.mrf.mxu0
    %490 = vdwg.mxu0
    %v491 = vpack.c.bf16 %v488, %v485
    %v493 = vunpack.c.l.b16 %v491
    %v494 = vunpack.c.h.b16 %v491
    %v495 = vpack.c.b16 %v493, %v493
    %v496 = vpack.c.b16 %v494, %v494
    %vm499 = vcmask 257024
    %500 = vst.msk [vmem:[#allocation7] sm:$0xf] %vm499, %v495
    %501 = vst.msk [vmem:[#allocation7 + $0x4] sm:$0xf] %vm499, %v496
    // Predicated region
    $region46: #{tpu_custom_call.1} parent=1 // pred_check
      _
    $region47: #{tpu_custom_call.1} parent=1 // pred_check_branch
      %503 = sbr.rel (0) target = $region49
    $region48: #{tpu_custom_call.1} parent=1 // pred_region
      %s505 = ssub.s32 128, 128
      %506 = vsyncadd [#allocation4], %s505
      %s507 = sshll.u32 [#allocation7], 4
      %s508 = int_to_ptr.vmem [resolvable:$true] %s507
      %513 = dma.vmem_to_hbm [thread:$0]  %s508, 128, %s9, [#allocation4], 64, 64, 4
    $region49: #{tpu_custom_call.1} parent=1 // pred_fallthru
      _
    // Predicated region
    $region50: #{tpu_custom_call.1} parent=1 // pred_check
      _
    $region51: #{tpu_custom_call.1} parent=1 // pred_check_branch
      %515 = sbr.rel (0) target = $region53
    $region52: #{tpu_custom_call.1} parent=1 // pred_region
      %516 = dma.done [#allocation4], 128
    $region53: #{tpu_custom_call.1} parent=1 // pred_fallthru
      _
    %517 = vsyncpa [#allocation3], 1
    %518 = vsyncpa [#allocation6], 1
    %519 = vsyncpa [#allocation4], 1

// kernel: tpu_custom_call.1
$region0: #{tpu_custom_call.1}
  #allocation0 [shape = 'u32[]', space=smem, size = 0x4, offset = 0x4, fixed_abs, tag = 'smem constant byte address 0x4 - core index']
  #allocation1 [shape = 'u32[144,128]{1,0:T(1,128)}', space=vmem, size = 0x12000, scoped, tag = 'internal scratch']
  %s0 = inlined_call_operand.hbm [shape: bf16[16,32], index: 0, kind: input, shape index: {}]
  %s1 = inlined_call_operand.vmem [shape: bf16[32,128], index: 1, kind: input, shape index: {}]
  %s2 = inlined_call_operand.vmem [shape: f32[1,128], index: 2, kind: input, shape index: {}]
  %s3 = inlined_call_operand.vmem [shape: bf16[128,128], index: 3, kind: input, shape index: {}]
  %s4 = inlined_call_operand.vmem [shape: f32[1,128], index: 4, kind: input, shape index: {}]
  %s5 = inlined_call_operand.hbm [shape: bf16[128,128], index: 5, kind: input, shape index: {}]
  %s6 = inlined_call_operand.vmem [shape: f32[1,128], index: 6, kind: input, shape index: {}]
  %s7 = inlined_call_operand.vmem [shape: bf16[128,32], index: 7, kind: input, shape index: {}]
  %s8 = inlined_call_operand.vmem [shape: f32[1,32], index: 8, kind: input, shape index: {}]
  %s9 = inlined_call_operand.hbm [shape: bf16[16,32], index: 9, kind: output, shape index: {}]
  %s10 = sld [smem:[#allocation0]]
  $region54: #{tpu_custom_call.1} parent=0
    _
  %s12 = ssub.s32 1, %s10
  %s13 = scalar_select 0, %s12, %s10
  $region1: #{tpu_custom_call.1} parent=0
    #allocation2 [shape = 'u8[4096]{0}', space=vmem, size = 0x1000, scoped, tag = 'input window, operand 0, single buffered']
    #allocation3 [shape = 's32[1]{0}', space=sflag, size = 0x4, scoped, tag = 'scoped memory for tpu_custom_call.1']
    #allocation4 [shape = 's32[1]{0}', space=sflag, size = 0x4, scoped, tag = 'scoped memory for tpu_custom_call.1']
    #allocation5 [shape = 'u8[32768]{0}', space=vmem, size = 0x8000, scoped, tag = 'input window, operand 5, single buffered']
    #allocation6 [shape = 's32[1]{0}', space=sflag, size = 0x4, scoped, tag = 'scoped memory for tpu_custom_call.1']
    #allocation7 [shape = 'u8[4096]{0}', space=vmem, size = 0x1000, scoped, tag = 'output window, operand 0, single buffered']
    %14 = vsyncpa [#allocation3], 0
    %15 = vsyncpa [#allocation6], 0
    %16 = vsyncpa [#allocation4], 0
    // Predicated region
    $region2: #{tpu_custom_call.1} parent=1 // pred_check
      _
    $region3: #{tpu_custom_call.1} parent=1 // pred_check_branch
      %18 = sbr.rel (0) target = $region5
    $region4: #{tpu_custom_call.1} parent=1 // pred_region
      %s20 = ssub.s32 128, 128
      %21 = vsyncadd [#allocation3], %s20
      %s22 = sshll.u32 [#allocation2], 4
      %s23 = int_to_ptr.vmem [resolvable:$true] %s22
      %28 = dma.hbm_to_vmem [thread:$0]  %s0, 128, %s23, [#allocation3], 64, 64, 4
    $region5: #{tpu_custom_call.1} parent=1 // pred_fallthru
      _
    // Predicated region
    $region6: #{tpu_custom_call.1} parent=1 // pred_check
      _
    $region7: #{tpu_custom_call.1} parent=1 // pred_check_branch
      %30 = sbr.rel (0) target = $region9
    $region8: #{tpu_custom_call.1} parent=1 // pred_region
      _
    $region9: #{tpu_custom_call.1} parent=1 // pred_fallthru
      _
    // Predicated region
    $region10: #{tpu_custom_call.1} parent=1 // pred_check
      _
    $region11: #{tpu_custom_call.1} parent=1 // pred_check_branch
      %32 = sbr.rel (0) target = $region13
    $region12: #{tpu_custom_call.1} parent=1 // pred_region
      _
    $region13: #{tpu_custom_call.1} parent=1 // pred_fallthru
      _
    // Predicated region
    $region14: #{tpu_custom_call.1} parent=1 // pred_check
      _
    $region15: #{tpu_custom_call.1} parent=1 // pred_check_branch
      %34 = sbr.rel (0) target = $region17
    $region16: #{tpu_custom_call.1} parent=1 // pred_region
      _
    $region17: #{tpu_custom_call.1} parent=1 // pred_fallthru
      _
    // Predicated region
    $region18: #{tpu_custom_call.1} parent=1 // pred_check
      _
    $region19: #{tpu_custom_call.1} parent=1 // pred_check_branch
      %36 = sbr.rel (0) target = $region21
    $region20: #{tpu_custom_call.1} parent=1 // pred_region
      _
    $region21: #{tpu_custom_call.1} parent=1 // pred_fallthru
      _
    // Predicated region
    $region22: #{tpu_custom_call.1} parent=1 // pred_check
      _
    $region23: #{tpu_custom_call.1} parent=1 // pred_check_branch
      %38 = sbr.rel (0) target = $region25
    $region24: #{tpu_custom_call.1} parent=1 // pred_region
      %s40 = ssub.s32 1024, 1024
      %41 = vsyncadd [#allocation6], %s40
      %s42 = sshll.u32 [#allocation5], 4
      %s43 = int_to_ptr.vmem [resolvable:$true] %s42
      %48 = dma.hbm_to_vmem [thread:$0]  %s5, 1024, %s43, [#allocation6], 64, 64, 4
    $region25: #{tpu_custom_call.1} parent=1 // pred_fallthru
      _
    // Predicated region
    $region26: #{tpu_custom_call.1} parent=1 // pred_check
      _
    $region27: #{tpu_custom_call.1} parent=1 // pred_check_branch
      %50 = sbr.rel (0) target = $region29
    $region28: #{tpu_custom_call.1} parent=1 // pred_region
      _
    $region29: #{tpu_custom_call.1} parent=1 // pred_fallthru
      _
    // Predicated region
    $region30: #{tpu_custom_call.1} parent=1 // pred_check
      _
    $region31: #{tpu_custom_call.1} parent=1 // pred_check_branch
      %52 = sbr.rel (0) target = $region33
    $region32: #{tpu_custom_call.1} parent=1 // pred_region
      _
    $region33: #{tpu_custom_call.1} parent=1 // pred_fallthru
      _
    // Predicated region
    $region34: #{tpu_custom_call.1} parent=1 // pred_check
      _
    $region35: #{tpu_custom_call.1} parent=1 // pred_check_branch
      %54 = sbr.rel (0) target = $region37
    $region36: #{tpu_custom_call.1} parent=1 // pred_region
      _
    $region37: #{tpu_custom_call.1} parent=1 // pred_fallthru
      _
    // Predicated region
    $region38: #{tpu_custom_call.1} parent=1 // pred_check
      _
    $region39: #{tpu_custom_call.1} parent=1 // pred_check_branch
      %56 = sbr.rel (0) target = $region41
    $region40: #{tpu_custom_call.1} parent=1 // pred_region
      %57 = dma.done [#allocation3], 128
    $region41: #{tpu_custom_call.1} parent=1 // pred_fallthru
      _
    // Predicated region
    $region42: #{tpu_custom_call.1} parent=1 // pred_check
      _
    $region43: #{tpu_custom_call.1} parent=1 // pred_check_branch
      %59 = sbr.rel (0) target = $region45
    $region44: #{tpu_custom_call.1} parent=1 // pred_region
      %60 = dma.done [#allocation6], 1024
    $region45: #{tpu_custom_call.1} parent=1 // pred_fallthru
      _
    %v62 = vld [vmem:[#allocation2] sm:$0xf]
    %v63 = vld [vmem:[#allocation2 + $0x4] sm:$0xf]
    %v64 = vld [vmem:[%s1] sm:$0xf]
    %v65 = vld [vmem:[%s1 + $0x4] sm:$0xf]
    %v66 = vld [vmem:[%s1 + $0x8] sm:$0xf]
    %v67 = vld [vmem:[%s1 + $0xc] sm:$0xf]
    %v68 = vld [vmem:[%s2] sm:$0x1]
    %v70 = vlaneseq
    %v71 = vshrl.u32 %v70, 7
    %v72 = vsub.s32 0, %v71
    %v73 = vrot.slane %v68, %v72
    %v77 = vunpack.c.l.b16 %v62
    %v78 = vunpack.c.l.b16 %v63
    %v79 = vpack.c.b16 %v78, %v77
    %v84 = vunpack.c.l.b16 %v64
    %v85 = vunpack.c.l.b16 %v65
    %v86 = vunpack.c.l.b16 %v66
    %v87 = vunpack.c.l.b16 %v67
    %v88 = vpack.c.b16 %v85, %v84
    %v89 = vpack.c.b16 %v87, %v86
    %vm92 = vcmask 261120
    %v94 = vsel %vm92, %v79, 0
    %96 = vmatprep.subr.bf16.mxu0 0
    %97 = vmatpush1.bf16.msra.mxu0 0
    %98 = vmatprep.subr.bf16.mxu0 0
    %99 = vmatpush1.bf16.msra.mxu0 0
    %100 = vmatprep.subr.bf16.mxu0 0
    %101 = vmatpush1.bf16.msra.mxu0 0
    %102 = vmatprep.subr.bf16.mxu0 0
    %103 = vmatpush1.bf16.msra.mxu0 0
    %104 = vmatprep.subr.bf16.mxu0 0
    %105 = vmatpush1.bf16.msra.mxu0 0
    %106 = vmatprep.subr.bf16.mxu0 0
    %107 = vmatpush1.bf16.msra.mxu0 0
    %108 = vmatprep.subr.bf16.mxu0 0
    %109 = vmatpush1.bf16.msra.mxu0 %v89
    %110 = vmatprep.subr.bf16.mxu0 0
    %111 = vmatpush1.bf16.msra.mxu0 %v88
    %112 = vmatprep.subr.bf16.mxu0 0
    %113 = vmatpush2.bf16.msra.mxu0 0
    %114 = vmatprep.subr.bf16.mxu0 0
    %115 = vmatpush2.bf16.msra.mxu0 0
    %116 = vmatprep.subr.bf16.mxu0 0
    %117 = vmatpush2.bf16.msra.mxu0 0
    %118 = vmatprep.subr.bf16.mxu0 0
    %119 = vmatpush2.bf16.msra.mxu0 0
    %120 = vmatprep.subr.bf16.mxu0 0
    %121 = vmatpush2.bf16.msra.mxu0 0
    %122 = vmatprep.subr.bf16.mxu0 0
    %123 = vmatpush2.bf16.msra.mxu0 0
    %124 = vmatprep.subr.bf16.mxu0 0
    %125 = vmatpush2.bf16.msra.mxu0 0
    %126 = vmatprep.subr.bf16.mxu0 0
    %127 = vmatpush2.bf16.msra.mxu0 0
    %128 = vmatprep.mubr.bf16.mxu0 0
    %129 = vmatmul.mubr.bf16.gmra.mxu0 %v94
    %v130 = vpop.f32.mrf.mxu0
    %v131 = vadd.f32 %v73, %v130
    %v132 = vpop.f32.mrf.mxu0
    %v133 = vpop.f32.mrf.mxu0
    %v134 = vadd.f32 %v73, %v133
    %v135 = vpop.f32.mrf.mxu0
    %136 = vdwg.mxu0
    %v137 = vpack.c.bf16 %v134, %v131
    %v138 = vld [vmem:[#allocation5] sm:$0xf]
    %v139 = vld [vmem:[#allocation5 + $0x4] sm:$0xf]
    %v140 = vld [vmem:[#allocation5 + $0x8] sm:$0xf]
    %v141 = vld [vmem:[#allocation5 + $0xc] sm:$0xf]
    %v142 = vld [vmem:[#allocation5 + $0x10] sm:$0xf]
    %v143 = vld [vmem:[#allocation5 + $0x14] sm:$0xf]
    %v144 = vld [vmem:[#allocation5 + $0x18] sm:$0xf]
    %v145 = vld [vmem:[#allocation5 + $0x1c] sm:$0xf]
    %v146 = vld [vmem:[#allocation5 + $0x20] sm:$0xf]
    %v147 = vld [vmem:[#allocation5 + $0x24] sm:$0xf]
    %v148 = vld [vmem:[#allocation5 + $0x28] sm:$0xf]
    %v149 = vld [vmem:[#allocation5 + $0x2c] sm:$0xf]
    %v150 = vld [vmem:[#allocation5 + $0x30] sm:$0xf]
    %v151 = vld [vmem:[#allocation5 + $0x34] sm:$0xf]
    %v152 = vld [vmem:[#allocation5 + $0x38] sm:$0xf]
    %v153 = vld [vmem:[#allocation5 + $0x3c] sm:$0xf]
    %v154 = vld [vmem:[%s6] sm:$0x1]
    %v156 = vlaneseq
    %v157 = vshrl.u32 %v156, 7
    %v158 = vsub.s32 0, %v157
    %v159 = vrot.slane %v154, %v158
    %v177 = vunpack.c.l.b16 %v138
    %v178 = vunpack.c.l.b16 %v139
    %v179 = vunpack.c.l.b16 %v140
    %v180 = vunpack.c.l.b16 %v141
    %v181 = vunpack.c.l.b16 %v142
    %v182 = vunpack.c.l.b16 %v143
    %v183 = vunpack.c.l.b16 %v144
    %v184 = vunpack.c.l.b16 %v145
    %v185 = vunpack.c.l.b16 %v146
    %v186 = vunpack.c.l.b16 %v147
    %v187 = vunpack.c.l.b16 %v148
    %v188 = vunpack.c.l.b16 %v149
    %v189 = vunpack.c.l.b16 %v150
    %v190 = vunpack.c.l.b16 %v151
    %v191 = vunpack.c.l.b16 %v152
    %v192 = vunpack.c.l.b16 %v153
    %v193 = vpack.c.b16 %v178, %v177
    %v194 = vpack.c.b16 %v180, %v179
    %v195 = vpack.c.b16 %v182, %v181
    %v196 = vpack.c.b16 %v184, %v183
    %v197 = vpack.c.b16 %v186, %v185
    %v198 = vpack.c.b16 %v188, %v187
    %v199 = vpack.c.b16 %v190, %v189
    %v200 = vpack.c.b16 %v192, %v191
    %209 = vmatprep.subr.bf16.mxu0 0
    %210 = vmatpush1.bf16.msra.mxu0 %v200
    %211 = vmatprep.subr.bf16.mxu0 0
    %212 = vmatpush1.bf16.msra.mxu0 %v199
    %213 = vmatprep.subr.bf16.mxu0 0
    %214 = vmatpush1.bf16.msra.mxu0 %v198
    %215 = vmatprep.subr.bf16.mxu0 0
    %216 = vmatpush1.bf16.msra.mxu0 %v197
    %217 = vmatprep.subr.bf16.mxu0 0
    %218 = vmatpush1.bf16.msra.mxu0 %v196
    %219 = vmatprep.subr.bf16.mxu0 0
    %220 = vmatpush1.bf16.msra.mxu0 %v195
    %221 = vmatprep.subr.bf16.mxu0 0
    %222 = vmatpush1.bf16.msra.mxu0 %v194
    %223 = vmatprep.subr.bf16.mxu0 0
    %224 = vmatpush1.bf16.msra.mxu0 %v193
    %225 = vmatprep.subr.bf16.mxu0 0
    %226 = vmatpush2.bf16.msra.mxu0 0
    %227 = vmatprep.subr.bf16.mxu0 0
    %228 = vmatpush2.bf16.msra.mxu0 0
    %229 = vmatprep.subr.bf16.mxu0 0
    %230 = vmatpush2.bf16.msra.mxu0 0
    %231 = vmatprep.subr.bf16.mxu0 0
    %232 = vmatpush2.bf16.msra.mxu0 0
    %233 = vmatprep.subr.bf16.mxu0 0
    %234 = vmatpush2.bf16.msra.mxu0 0
    %235 = vmatprep.subr.bf16.mxu0 0
    %236 = vmatpush2.bf16.msra.mxu0 0
    %237 = vmatprep.subr.bf16.mxu0 0
    %238 = vmatpush2.bf16.msra.mxu0 0
    %239 = vmatprep.subr.bf16.mxu0 0
    %240 = vmatpush2.bf16.msra.mxu0 0
    %241 = vmatprep.mubr.bf16.mxu0 0
    %242 = vmatmul.mubr.bf16.gmra.mxu0 %v137
    %v243 = vpop.f32.mrf.mxu0
    %v244 = vadd.f32 %v159, %v243
    %v245 = vpop.f32.mrf.mxu0
    %v246 = vpop.f32.mrf.mxu0
    %v247 = vadd.f32 %v159, %v246
    %v248 = vpop.f32.mrf.mxu0
    %249 = vdwg.mxu0
    %v250 = vxor.u32 %v244, 2147483648
    %v251 = vxor.u32 %v247, 2147483648
    %v252 = vmul.f32 %v250, 1.442695
    %v253 = vpow.pop %v252
    %v254 = vmul.f32 %v251, 1.442695
    %v255 = vpow.pop %v254
    %v256 = vadd.f32 %v253, 1.0
    %v257 = vadd.f32 %v255, 1.0
    %v258 = vrcp.pop %v256
    %v259 = vmul.f32 1.0, %v258
    %v260 = vrcp.pop %v257
    %v261 = vmul.f32 1.0, %v260
    %v262 = vmul.f32 %v244, %v259
    %v263 = vmul.f32 %v247, %v261
    %v264 = vld [vmem:[%s3] sm:$0xf]
    %v265 = vld [vmem:[%s3 + $0x4] sm:$0xf]
    %v266 = vld [vmem:[%s3 + $0x8] sm:$0xf]
    %v267 = vld [vmem:[%s3 + $0xc] sm:$0xf]
    %v268 = vld [vmem:[%s3 + $0x10] sm:$0xf]
    %v269 = vld [vmem:[%s3 + $0x14] sm:$0xf]
    %v270 = vld [vmem:[%s3 + $0x18] sm:$0xf]
    %v271 = vld [vmem:[%s3 + $0x1c] sm:$0xf]
    %v272 = vld [vmem:[%s3 + $0x20] sm:$0xf]
    %v273 = vld [vmem:[%s3 + $0x24] sm:$0xf]
    %v274 = vld [vmem:[%s3 + $0x28] sm:$0xf]
    %v275 = vld [vmem:[%s3 + $0x2c] sm:$0xf]
    %v276 = vld [vmem:[%s3 + $0x30] sm:$0xf]
    %v277 = vld [vmem:[%s3 + $0x34] sm:$0xf]
    %v278 = vld [vmem:[%s3 + $0x38] sm:$0xf]
    %v279 = vld [vmem:[%s3 + $0x3c] sm:$0xf]
    %v280 = vld [vmem:[%s4] sm:$0x1]
    %v282 = vlaneseq
    %v283 = vshrl.u32 %v282, 7
    %v284 = vsub.s32 0, %v283
    %v285 = vrot.slane %v280, %v284
    %v303 = vunpack.c.l.b16 %v264
    %v304 = vunpack.c.l.b16 %v265
    %v305 = vunpack.c.l.b16 %v266
    %v306 = vunpack.c.l.b16 %v267
    %v307 = vunpack.c.l.b16 %v268
    %v308 = vunpack.c.l.b16 %v269
    %v309 = vunpack.c.l.b16 %v270
    %v310 = vunpack.c.l.b16 %v271
    %v311 = vunpack.c.l.b16 %v272
    %v312 = vunpack.c.l.b16 %v273
    %v313 = vunpack.c.l.b16 %v274
    %v314 = vunpack.c.l.b16 %v275
    %v315 = vunpack.c.l.b16 %v276
    %v316 = vunpack.c.l.b16 %v277
    %v317 = vunpack.c.l.b16 %v278
    %v318 = vunpack.c.l.b16 %v279
    %v319 = vpack.c.b16 %v304, %v303
    %v320 = vpack.c.b16 %v306, %v305
    %v321 = vpack.c.b16 %v308, %v307
    %v322 = vpack.c.b16 %v310, %v309
    %v323 = vpack.c.b16 %v312, %v311
    %v324 = vpack.c.b16 %v314, %v313
    %v325 = vpack.c.b16 %v316, %v315
    %v326 = vpack.c.b16 %v318, %v317
    %335 = vmatprep.subr.bf16.mxu0 0
    %336 = vmatpush1.bf16.msra.mxu0 %v326
    %337 = vmatprep.subr.bf16.mxu0 0
    %338 = vmatpush1.bf16.msra.mxu0 %v325
    %339 = vmatprep.subr.bf16.mxu0 0
    %340 = vmatpush1.bf16.msra.mxu0 %v324
    %341 = vmatprep.subr.bf16.mxu0 0
    %342 = vmatpush1.bf16.msra.mxu0 %v323
    %343 = vmatprep.subr.bf16.mxu0 0
    %344 = vmatpush1.bf16.msra.mxu0 %v322
    %345 = vmatprep.subr.bf16.mxu0 0
    %346 = vmatpush1.bf16.msra.mxu0 %v321
    %347 = vmatprep.subr.bf16.mxu0 0
    %348 = vmatpush1.bf16.msra.mxu0 %v320
    %349 = vmatprep.subr.bf16.mxu0 0
    %350 = vmatpush1.bf16.msra.mxu0 %v319
    %351 = vmatprep.subr.bf16.mxu0 0
    %352 = vmatpush2.bf16.msra.mxu0 0
    %353 = vmatprep.subr.bf16.mxu0 0
    %354 = vmatpush2.bf16.msra.mxu0 0
    %355 = vmatprep.subr.bf16.mxu0 0
    %356 = vmatpush2.bf16.msra.mxu0 0
    %357 = vmatprep.subr.bf16.mxu0 0
    %358 = vmatpush2.bf16.msra.mxu0 0
    %359 = vmatprep.subr.bf16.mxu0 0
    %360 = vmatpush2.bf16.msra.mxu0 0
    %361 = vmatprep.subr.bf16.mxu0 0
    %362 = vmatpush2.bf16.msra.mxu0 0
    %363 = vmatprep.subr.bf16.mxu0 0
    %364 = vmatpush2.bf16.msra.mxu0 0
    %365 = vmatprep.subr.bf16.mxu0 0
    %366 = vmatpush2.bf16.msra.mxu0 0
    %367 = vmatprep.mubr.bf16.mxu0 0
    %368 = vmatmul.mubr.bf16.gmra.mxu0 %v137
    %v369 = vpop.f32.mrf.mxu0
    %v370 = vadd.f32 %v285, %v369
    %v371 = vpop.f32.mrf.mxu0
    %v372 = vpop.f32.mrf.mxu0
    %v373 = vadd.f32 %v285, %v372
    %v374 = vpop.f32.mrf.mxu0
    %375 = vdwg.mxu0
    %v376 = vmul.f32 %v370, %v262
    %v377 = vmul.f32 %v373, %v263
    %v378 = vpack.c.bf16 %v377, %v376
    %v379 = vld [vmem:[%s7] sm:$0xf]
    %v380 = vld [vmem:[%s7 + $0x4] sm:$0xf]
    %v381 = vld [vmem:[%s7 + $0x8] sm:$0xf]
    %v382 = vld [vmem:[%s7 + $0xc] sm:$0xf]
    %v383 = vld [vmem:[%s7 + $0x10] sm:$0xf]
    %v384 = vld [vmem:[%s7 + $0x14] sm:$0xf]
    %v385 = vld [vmem:[%s7 + $0x18] sm:$0xf]
    %v386 = vld [vmem:[%s7 + $0x1c] sm:$0xf]
    %v387 = vld [vmem:[%s7 + $0x20] sm:$0xf]
    %v388 = vld [vmem:[%s7 + $0x24] sm:$0xf]
    %v389 = vld [vmem:[%s7 + $0x28] sm:$0xf]
    %v390 = vld [vmem:[%s7 + $0x2c] sm:$0xf]
    %v391 = vld [vmem:[%s7 + $0x30] sm:$0xf]
    %v392 = vld [vmem:[%s7 + $0x34] sm:$0xf]
    %v393 = vld [vmem:[%s7 + $0x38] sm:$0xf]
    %v394 = vld [vmem:[%s7 + $0x3c] sm:$0xf]
    %v395 = vld [vmem:[%s8] sm:$0x1]
    %v397 = vlaneseq
    %v398 = vshrl.u32 %v397, 7
    %v399 = vsub.s32 0, %v398
    %v400 = vrot.slane %v395, %v399
    %v418 = vunpack.c.l.b16 %v379
    %v419 = vunpack.c.l.b16 %v380
    %v420 = vunpack.c.l.b16 %v381
    %v421 = vunpack.c.l.b16 %v382
    %v422 = vunpack.c.l.b16 %v383
    %v423 = vunpack.c.l.b16 %v384
    %v424 = vunpack.c.l.b16 %v385
    %v425 = vunpack.c.l.b16 %v386
    %v426 = vunpack.c.l.b16 %v387
    %v427 = vunpack.c.l.b16 %v388
    %v428 = vunpack.c.l.b16 %v389
    %v429 = vunpack.c.l.b16 %v390
    %v430 = vunpack.c.l.b16 %v391
    %v431 = vunpack.c.l.b16 %v392
    %v432 = vunpack.c.l.b16 %v393
    %v433 = vunpack.c.l.b16 %v394
    %v434 = vpack.c.b16 %v419, %v418
    %v435 = vpack.c.b16 %v421, %v420
    %v436 = vpack.c.b16 %v423, %v422
    %v437 = vpack.c.b16 %v425, %v424
    %v438 = vpack.c.b16 %v427, %v426
    %v439 = vpack.c.b16 %v429, %v428
    %v440 = vpack.c.b16 %v431, %v430
    %v441 = vpack.c.b16 %v433, %v432
    %450 = vmatprep.subr.bf16.mxu0 0
    %451 = vmatpush1.bf16.msra.mxu0 %v441
    %452 = vmatprep.subr.bf16.mxu0 0
    %453 = vmatpush1.bf16.msra.mxu0 %v440
    %454 = vmatprep.subr.bf16.mxu0 0
    %455 = vmatpush1.bf16.msra.mxu0 %v439
    %456 = vmatprep.subr.bf16.mxu0 0
    %457 = vmatpush1.bf16.msra.mxu0 %v438
    %458 = vmatprep.subr.bf16.mxu0 0
    %459 = vmatpush1.bf16.msra.mxu0 %v437
    %460 = vmatprep.subr.bf16.mxu0 0
    %461 = vmatpush1.bf16.msra.mxu0 %v436
    %462 = vmatprep.subr.bf16.mxu0 0
    %463 = vmatpush1.bf16.msra.mxu0 %v435
    %464 = vmatprep.subr.bf16.mxu0 0
    %465 = vmatpush1.bf16.msra.mxu0 %v434
    %466 = vmatprep.subr.bf16.mxu0 0
    %467 = vmatpush2.bf16.msra.mxu0 0
    %468 = vmatprep.subr.bf16.mxu0 0
    %469 = vmatpush2.bf16.msra.mxu0 0
    %470 = vmatprep.subr.bf16.mxu0 0
    %471 = vmatpush2.bf16.msra.mxu0 0
    %472 = vmatprep.subr.bf16.mxu0 0
    %473 = vmatpush2.bf16.msra.mxu0 0
    %474 = vmatprep.subr.bf16.mxu0 0
    %475 = vmatpush2.bf16.msra.mxu0 0
    %476 = vmatprep.subr.bf16.mxu0 0
    %477 = vmatpush2.bf16.msra.mxu0 0
    %478 = vmatprep.subr.bf16.mxu0 0
    %479 = vmatpush2.bf16.msra.mxu0 0
    %480 = vmatprep.subr.bf16.mxu0 0
    %481 = vmatpush2.bf16.msra.mxu0 0
    %482 = vmatprep.mubr.bf16.mxu0 0
    %483 = vmatmul.mubr.bf16.gmra.mxu0 %v378
    %v484 = vpop.f32.mrf.mxu0
    %v485 = vadd.f32 %v400, %v484
    %v486 = vpop.f32.mrf.mxu0
    %v487 = vpop.f32.mrf.mxu0
    %v488 = vadd.f32 %v400, %v487
    %v489 = vpop.f32.mrf.mxu0
    %490 = vdwg.mxu0
    %v491 = vpack.c.bf16 %v488, %v485
    %v493 = vunpack.c.l.b16 %v491
    %v494 = vunpack.c.h.b16 %v491
    %v495 = vpack.c.b16 %v493, %v493
    %v496 = vpack.c.b16 %v494, %v494
    %vm499 = vcmask 257024
    %500 = vst.msk [vmem:[#allocation7] sm:$0xf] %vm499, %v495
    %501 = vst.msk [vmem:[#allocation7 + $0x4] sm:$0xf] %vm499, %v496
    // Predicated region
    $region46: #{tpu_custom_call.1} parent=1 // pred_check
      _
    $region47: #{tpu_custom_call.1} parent=1 // pred_check_branch
      %503 = sbr.rel (0) target = $region49
    $region48: #{tpu_custom_call.1} parent=1 // pred_region
      %s505 = ssub.s32 128, 128
      %506 = vsyncadd [#allocation4], %s505
      %s507 = sshll.u32 [#allocation7], 4
      %s508 = int_to_ptr.vmem [resolvable:$true] %s507
      %513 = dma.vmem_to_hbm [thread:$0]  %s508, 128, %s9, [#allocation4], 64, 64, 4
    $region49: #{tpu_custom_call.1} parent=1 // pred_fallthru
      _
    // Predicated region
    $region50: #{tpu_custom_call.1} parent=1 // pred_check
      _
    $region51: #{tpu_custom_call.1} parent=1 // pred_check_branch
      %515 = sbr.rel (0) target = $region53
    $region52: #{tpu_custom_call.1} parent=1 // pred_region
      %516 = dma.done [#allocation4], 128
    $region53: #{tpu_custom_call.1} parent=1 // pred_fallthru
      _
    %517 = vsyncpa [#allocation3], 1
    %518 = vsyncpa [#allocation6], 1
    %519 = vsyncpa [#allocation4], 1

</llo_original>
